<compile_context>
chip_gen: v6e
topology: v6e:2x2x1
jax: 0.10.0
libtpu: 0.0.40
codegen_flags: <defaults>
</compile_context>

<pallas_src>
import functools

import jax
import jax.numpy as jnp
from jax.experimental import pallas as pl
from jax.experimental.pallas import tpu as pltpu

HIDDEN1 = 128
HIDDEN2 = 256
NEG_INF = jnp.float32(-1e30)  # finite "-inf" for padded logit lanes


def _round_up(x, m):
    return ((x + m - 1) // m) * m


def actor_kernel(x_ref, w1_ref, b1_ref, w2_ref, b2_ref, w3_ref, b3_ref, o_ref,
                 *, mxu_dtype):
    x = x_ref[...].astype(mxu_dtype)

    # Layer 1: Linear(state -> 128) + ReLU.  MXU matmul, f32 accumulate;
    # bias / ReLU stay in f32 (v5e VPU/EUP have no bf16 path).
    h1 = jnp.dot(x, w1_ref[...].astype(mxu_dtype),
                 preferred_element_type=jnp.float32)
    h1 = jnp.maximum(h1 + b1_ref[...], 0.0)

    # Layer 2: Linear(128 -> 256) + ReLU.
    h2 = jnp.dot(h1.astype(mxu_dtype), w2_ref[...].astype(mxu_dtype),
                 preferred_element_type=jnp.float32)
    h2 = jnp.maximum(h2 + b2_ref[...], 0.0)

    # Layer 3: Linear(256 -> A_pad).  Padded action lanes carry bias = -1e30,
    # so exp() zeroes them below; the store is lane-dense (last dim = 128k).
    logits = jnp.dot(h2.astype(mxu_dtype), w3_ref[...].astype(mxu_dtype),
                     preferred_element_type=jnp.float32)
    logits = logits + b3_ref[...]

    # Numerically stable softmax over the action axis; the divide goes to the
    # otherwise-idle EUP via the approximate reciprocal.
    m = jnp.max(logits, axis=-1, keepdims=True)
    e = jnp.exp(logits - m)
    denom = jnp.sum(e, axis=-1, keepdims=True)
    o_ref[...] = (e * pl.reciprocal(denom, approx=True)).astype(o_ref.dtype)


def actor_forward(x, params, *, block_b=1024, mxu_dtype=jnp.float32):
    """x: (B, state_size) f32.  params: dict of W1,b1,W2,b2,W3,b3."""
    B, state_size = x.shape
    action_size = params["W3"].shape[1]

    # --- pad the action dim to a lane-dense multiple of 128 ----------------
    a_pad = max(_round_up(action_size, 128), 128)
    w3, b3 = params["W3"], params["b3"]
    if a_pad != action_size:
        w3 = jnp.pad(w3, ((0, 0), (0, a_pad - action_size)))
        b3 = jnp.pad(b3, ((0, 0), (0, a_pad - action_size)),
                     constant_values=NEG_INF)

    # --- pick the batch tile and pad the batch to a multiple of it ---------
    tb = _round_up(min(block_b, _round_up(B, 8)), 8)
    b_padded = _round_up(B, tb)
    if b_padded != B:
        x = jnp.pad(x, ((0, b_padded - B), (0, 0)))
    grid = (b_padded // tb,)

    def const_spec(shape):
        # Weights/biases: whole array, same block every grid step -> one DMA.
        return pl.BlockSpec(shape, lambda i: (0,) * len(shape))

    flops = 2 * b_padded * (state_size * HIDDEN1
                            + HIDDEN1 * HIDDEN2
                            + HIDDEN2 * a_pad)
    bytes_accessed = 4 * (b_padded * (state_size + a_pad)
                          + state_size * HIDDEN1 + HIDDEN1
                          + HIDDEN1 * HIDDEN2 + HIDDEN2
                          + HIDDEN2 * a_pad + a_pad)

    out = pl.pallas_call(
        functools.partial(actor_kernel, mxu_dtype=mxu_dtype),
        out_shape=jax.ShapeDtypeStruct((b_padded, a_pad), jnp.float32),
        grid=grid,
        in_specs=[
            pl.BlockSpec((tb, state_size), lambda i: (i, 0)),   # x (streamed)
            const_spec((state_size, HIDDEN1)),                  # W1 (resident)
            const_spec((1, HIDDEN1)),                           # b1
            const_spec((HIDDEN1, HIDDEN2)),                     # W2
            const_spec((1, HIDDEN2)),                           # b2
            const_spec((HIDDEN2, a_pad)),                       # W3 (padded)
            const_spec((1, a_pad)),                             # b3 (padded)
        ],
        out_specs=pl.BlockSpec((tb, a_pad), lambda i: (i, 0)),
        compiler_params=pltpu.CompilerParams(
            dimension_semantics=("parallel",)),
        cost_estimate=pl.CostEstimate(
            flops=flops,
            transcendentals=b_padded * a_pad,
            bytes_accessed=bytes_accessed),
    )(x, params["W1"], params["b1"], params["W2"], params["b2"], w3, b3)

    return out[:B, :action_size]


def init_actor_params(key, state_size, action_size):
    """Deterministic synthetic init (uniform, fan-in scaled like nn.Linear)."""
    ks = jax.random.split(key, 6)

    def lin(kw, kb, fan_in, fan_out):
        bound = 1.0 / jnp.sqrt(jnp.float32(fan_in))
        W = jax.random.uniform(kw, (fan_in, fan_out), jnp.float32, -bound, bound)
        b = jax.random.uniform(kb, (1, fan_out), jnp.float32, -bound, bound)
        return W, b

    W1, b1 = lin(ks[0], ks[1], state_size, HIDDEN1)
    W2, b2 = lin(ks[2], ks[3], HIDDEN1, HIDDEN2)
    W3, b3 = lin(ks[4], ks[5], HIDDEN2, action_size)
    return {"W1": W1, "b1": b1, "W2": W2, "b2": b2, "W3": W3, "b3": b3}


if __name__ == "__main__":
    key = jax.random.PRNGKey(0)
    k_x, k_p = jax.random.split(key)

    batch = 8
    state_size = 16
    action_size = 8

    x = jax.random.normal(k_x, (batch, state_size), jnp.float32)
    params = init_actor_params(k_p, state_size, action_size)

    fwd = jax.jit(functools.partial(actor_forward, mxu_dtype=jnp.float32))
    probs = fwd(x, params)
    jax.block_until_ready(probs)

    # Sanity checks: shape, rows sum to 1 (approx reciprocal -> ~1e-3 tol),
    # matches the pure-JAX f32 reference.
    assert probs.shape == (batch, action_size)
    row_sums = jnp.sum(probs, axis=-1)
    assert jnp.allclose(row_sums, jnp.ones_like(row_sums), atol=5e-3)

    def ref(x, p):
        h1 = jnp.maximum(x @ p["W1"] + p["b1"], 0.0)
        h2 = jnp.maximum(h1 @ p["W2"] + p["b2"], 0.0)
        logits = h2 @ p["W3"] + p["b3"]
        return jax.nn.softmax(logits, axis=-1)

    assert jnp.allclose(probs, ref(x, params), atol=5e-3, rtol=5e-3)

    # bf16 MXU-operand path (the recommended production config on v6e/v7x):
    # validate it runs and still emits valid probability rows.
    probs_bf16 = jax.jit(
        functools.partial(actor_forward, mxu_dtype=jnp.bfloat16))(x, params)
    jax.block_until_ready(probs_bf16)
    assert probs_bf16.shape == (batch, action_size)
    rs = jnp.sum(probs_bf16, axis=-1)
    assert jnp.allclose(rs, jnp.ones_like(rs), atol=2e-2)

    print("KERNEL_OK")
</pallas_src>

<mosaic_0001>
module attributes {stable_mosaic.version = 11 : i64} {
  func.func @actor_kernel(%arg0: i32, %arg1: memref<8x16xf32, #tpu.memory_space<vmem>>, %arg2: memref<16x128xf32, #tpu.memory_space<vmem>>, %arg3: memref<1x128xf32, #tpu.memory_space<vmem>>, %arg4: memref<128x256xf32, #tpu.memory_space<vmem>>, %arg5: memref<1x256xf32, #tpu.memory_space<vmem>>, %arg6: memref<256x128xf32, #tpu.memory_space<vmem>>, %arg7: memref<1x128xf32, #tpu.memory_space<vmem>>, %arg8: memref<8x128xf32, #tpu.memory_space<vmem>>) attributes {dimension_semantics = [#tpu.dimension_semantics<parallel>], iteration_bounds = array<i64: 1>, scalar_prefetch = 0 : i64, scratch_operands = 0 : i64, tpu.core_type = #tpu.core_type<tc>, window_params = [{transform_indices = @transform_0, window_bounds = array<i64: 8, 16>}, {pipeline_mode = #tpu.pipeline_mode<synchronous>, transform_indices = @transform_1, window_bounds = array<i64: 16, 128>}, {pipeline_mode = #tpu.pipeline_mode<synchronous>, transform_indices = @transform_2, window_bounds = array<i64: 1, 128>}, {pipeline_mode = #tpu.pipeline_mode<synchronous>, transform_indices = @transform_3, window_bounds = array<i64: 128, 256>}, {pipeline_mode = #tpu.pipeline_mode<synchronous>, transform_indices = @transform_4, window_bounds = array<i64: 1, 256>}, {pipeline_mode = #tpu.pipeline_mode<synchronous>, transform_indices = @transform_5, window_bounds = array<i64: 256, 128>}, {pipeline_mode = #tpu.pipeline_mode<synchronous>, transform_indices = @transform_6, window_bounds = array<i64: 1, 128>}, {transform_indices = @transform_7, window_bounds = array<i64: 8, 128>}]} {
    %c0 = arith.constant 0 : index
    %c0_0 = arith.constant 0 : index
    %0 = vector.load %arg1[%c0, %c0_0] : memref<8x16xf32, #tpu.memory_space<vmem>>, vector<8x16xf32>
    %c0_1 = arith.constant 0 : index
    %c0_2 = arith.constant 0 : index
    %1 = vector.load %arg2[%c0_1, %c0_2] : memref<16x128xf32, #tpu.memory_space<vmem>>, vector<16x128xf32>
    %cst = arith.constant dense<0.000000e+00> : vector<8x128xf32>
    %2 = tpu.matmul %0, %1, %cst {dimension_numbers = #tpu.dot_dimension_numbers<[1], [0], [0], [1], [0, 0, 1, 1], [], []>} : vector<8x16xf32>, vector<16x128xf32>, vector<8x128xf32> -> vector<8x128xf32>
    %c0_3 = arith.constant 0 : index
    %c0_4 = arith.constant 0 : index
    %3 = vector.load %arg3[%c0_3, %c0_4] : memref<1x128xf32, #tpu.memory_space<vmem>>, vector<1x128xf32>
    %4 = vector.broadcast %3 : vector<1x128xf32> to vector<8x128xf32>
    %5 = arith.addf %2, %4 : vector<8x128xf32>
    %cst_5 = arith.constant 0.000000e+00 : f32
    %6 = vector.broadcast %cst_5 : f32 to vector<8x128xf32>
    %7 = arith.maximumf %5, %6 : vector<8x128xf32>
    %c0_6 = arith.constant 0 : index
    %c0_7 = arith.constant 0 : index
    %8 = vector.load %arg4[%c0_6, %c0_7] : memref<128x256xf32, #tpu.memory_space<vmem>>, vector<128x256xf32>
    %cst_8 = arith.constant dense<0.000000e+00> : vector<8x256xf32>
    %9 = tpu.matmul %7, %8, %cst_8 {dimension_numbers = #tpu.dot_dimension_numbers<[1], [0], [0], [1], [0, 0, 1, 1], [], []>} : vector<8x128xf32>, vector<128x256xf32>, vector<8x256xf32> -> vector<8x256xf32>
    %c0_9 = arith.constant 0 : index
    %c0_10 = arith.constant 0 : index
    %10 = vector.load %arg5[%c0_9, %c0_10] : memref<1x256xf32, #tpu.memory_space<vmem>>, vector<1x256xf32>
    %11 = vector.broadcast %10 : vector<1x256xf32> to vector<8x256xf32>
    %12 = arith.addf %9, %11 : vector<8x256xf32>
    %cst_11 = arith.constant 0.000000e+00 : f32
    %13 = vector.broadcast %cst_11 : f32 to vector<8x256xf32>
    %14 = arith.maximumf %12, %13 : vector<8x256xf32>
    %c0_12 = arith.constant 0 : index
    %c0_13 = arith.constant 0 : index
    %15 = vector.load %arg6[%c0_12, %c0_13] : memref<256x128xf32, #tpu.memory_space<vmem>>, vector<256x128xf32>
    %cst_14 = arith.constant dense<0.000000e+00> : vector<8x128xf32>
    %16 = tpu.matmul %14, %15, %cst_14 {dimension_numbers = #tpu.dot_dimension_numbers<[1], [0], [0], [1], [0, 0, 1, 1], [], []>} : vector<8x256xf32>, vector<256x128xf32>, vector<8x128xf32> -> vector<8x128xf32>
    %c0_15 = arith.constant 0 : index
    %c0_16 = arith.constant 0 : index
    %17 = vector.load %arg7[%c0_15, %c0_16] : memref<1x128xf32, #tpu.memory_space<vmem>>, vector<1x128xf32>
    %18 = vector.broadcast %17 : vector<1x128xf32> to vector<8x128xf32>
    %19 = arith.addf %16, %18 : vector<8x128xf32>
    %cst_17 = arith.constant dense<0xFF800000> : vector<8xf32>
    %20 = vector.multi_reduction <maximumf>, %19, %cst_17 [1] : vector<8x128xf32> to vector<8xf32>
    %21 = vector.shape_cast %20 : vector<8xf32> to vector<8x1xf32>
    %22 = vector.broadcast %21 : vector<8x1xf32> to vector<8x128xf32>
    %23 = arith.subf %19, %22 : vector<8x128xf32>
    %24 = math.exp %23 : vector<8x128xf32>
    %cst_18 = arith.constant dense<0.000000e+00> : vector<8xf32>
    %25 = vector.multi_reduction <add>, %24, %cst_18 [1] : vector<8x128xf32> to vector<8xf32>
    %26 = vector.shape_cast %25 : vector<8xf32> to vector<8x1xf32>
    %27 = tpu.reciprocal %26 {approx = true} : vector<8x1xf32> -> vector<8x1xf32>
    %28 = vector.broadcast %27 : vector<8x1xf32> to vector<8x128xf32>
    %29 = arith.mulf %24, %28 : vector<8x128xf32>
    %c0_19 = arith.constant 0 : index
    %c0_20 = arith.constant 0 : index
    %30 = vector.load %arg8[%c0_19, %c0_20] : memref<8x128xf32, #tpu.memory_space<vmem>>, vector<8x128xf32>
    tpu.vector_store %arg8[%c0_19, %c0_20], %29 {strides = array<i32>} : memref<8x128xf32, #tpu.memory_space<vmem>>, vector<8x128xf32>,
    return
  }
  func.func @transform_0(%arg0: i32) -> (i32, i32) {
    %c0_i32 = arith.constant 0 : i32
    %c0_i32_0 = arith.constant 0 : i32
    return %arg0, %c0_i32 : i32, i32
  }
  func.func @transform_1(%arg0: i32) -> (i32, i32) {
    %c0_i32 = arith.constant 0 : i32
    %c0_i32_0 = arith.constant 0 : i32
    %c0_i32_1 = arith.constant 0 : i32
    return %c0_i32, %c0_i32_0 : i32, i32
  }
  func.func @transform_2(%arg0: i32) -> (i32, i32) {
    %c0_i32 = arith.constant 0 : i32
    %c0_i32_0 = arith.constant 0 : i32
    %c0_i32_1 = arith.constant 0 : i32
    return %c0_i32, %c0_i32_0 : i32, i32
  }
  func.func @transform_3(%arg0: i32) -> (i32, i32) {
    %c0_i32 = arith.constant 0 : i32
    %c0_i32_0 = arith.constant 0 : i32
    %c0_i32_1 = arith.constant 0 : i32
    return %c0_i32, %c0_i32_0 : i32, i32
  }
  func.func @transform_4(%arg0: i32) -> (i32, i32) {
    %c0_i32 = arith.constant 0 : i32
    %c0_i32_0 = arith.constant 0 : i32
    %c0_i32_1 = arith.constant 0 : i32
    return %c0_i32, %c0_i32_0 : i32, i32
  }
  func.func @transform_5(%arg0: i32) -> (i32, i32) {
    %c0_i32 = arith.constant 0 : i32
    %c0_i32_0 = arith.constant 0 : i32
    %c0_i32_1 = arith.constant 0 : i32
    return %c0_i32, %c0_i32_0 : i32, i32
  }
  func.func @transform_6(%arg0: i32) -> (i32, i32) {
    %c0_i32 = arith.constant 0 : i32
    %c0_i32_0 = arith.constant 0 : i32
    %c0_i32_1 = arith.constant 0 : i32
    return %c0_i32, %c0_i32_0 : i32, i32
  }
  func.func @transform_7(%arg0: i32) -> (i32, i32) {
    %c0_i32 = arith.constant 0 : i32
    %c0_i32_0 = arith.constant 0 : i32
    return %arg0, %c0_i32 : i32, i32
  }
}

</mosaic_0001>

<llo_original>
// kernel: actor_forward.1
$region0: #{actor_forward.1}
  #allocation0 [shape = 'u32[]', space=smem, size = 0x4, offset = 0x4, fixed_abs, tag = 'smem constant byte address 0x4 - core index']
  #allocation1 [shape = 'u32[144,128]{1,0:T(1,128)}', space=vmem, size = 0x12000, scoped, tag = 'internal scratch']
  %s0 = inlined_call_operand.vmem [shape: f32[8,16], index: 0, kind: input, shape index: {}]
  %s1 = inlined_call_operand.vmem [shape: f32[16,128], index: 1, kind: input, shape index: {}]
  %s2 = inlined_call_operand.vmem [shape: f32[1,128], index: 2, kind: input, shape index: {}]
  %s3 = inlined_call_operand.vmem [shape: f32[128,256], index: 3, kind: input, shape index: {}]
  %s4 = inlined_call_operand.vmem [shape: f32[1,256], index: 4, kind: input, shape index: {}]
  %s5 = inlined_call_operand.vmem [shape: f32[256,128], index: 5, kind: input, shape index: {}]
  %s6 = inlined_call_operand.vmem [shape: f32[1,128], index: 6, kind: input, shape index: {}]
  %s7 = inlined_call_operand.hbm [shape: f32[8,128], index: 7, kind: output, shape index: {}]
  %s8 = sld [smem:[#allocation0]]
  $region38: #{actor_forward.1} parent=0
    _
  %s10 = ssub.s32 1, %s8
  %s11 = scalar_select 0, %s10, %s8
  $region1: #{actor_forward.1} parent=0
    #allocation2 [shape = 'u8[4096]{0}', space=vmem, size = 0x1000, scoped, tag = 'output window, operand 0, single buffered']
    #allocation3 [shape = 's32[1]{0}', space=sflag, size = 0x4, scoped, tag = 'scoped memory for actor_forward.1']
    %12 = vsyncpa [#allocation3], 0
    // Predicated region
    $region2: #{actor_forward.1} parent=1 // pred_check
      _
    $region3: #{actor_forward.1} parent=1 // pred_check_branch
      %14 = sbr.rel (0) target = $region5
    $region4: #{actor_forward.1} parent=1 // pred_region
      _
    $region5: #{actor_forward.1} parent=1 // pred_fallthru
      _
    // Predicated region
    $region6: #{actor_forward.1} parent=1 // pred_check
      _
    $region7: #{actor_forward.1} parent=1 // pred_check_branch
      %16 = sbr.rel (0) target = $region9
    $region8: #{actor_forward.1} parent=1 // pred_region
      _
    $region9: #{actor_forward.1} parent=1 // pred_fallthru
      _
    // Predicated region
    $region10: #{actor_forward.1} parent=1 // pred_check
      _
    $region11: #{actor_forward.1} parent=1 // pred_check_branch
      %18 = sbr.rel (0) target = $region13
    $region12: #{actor_forward.1} parent=1 // pred_region
      _
    $region13: #{actor_forward.1} parent=1 // pred_fallthru
      _
    // Predicated region
    $region14: #{actor_forward.1} parent=1 // pred_check
      _
    $region15: #{actor_forward.1} parent=1 // pred_check_branch
      %20 = sbr.rel (0) target = $region17
    $region16: #{actor_forward.1} parent=1 // pred_region
      _
    $region17: #{actor_forward.1} parent=1 // pred_fallthru
      _
    // Predicated region
    $region18: #{actor_forward.1} parent=1 // pred_check
      _
    $region19: #{actor_forward.1} parent=1 // pred_check_branch
      %22 = sbr.rel (0) target = $region21
    $region20: #{actor_forward.1} parent=1 // pred_region
      _
    $region21: #{actor_forward.1} parent=1 // pred_fallthru
      _
    // Predicated region
    $region22: #{actor_forward.1} parent=1 // pred_check
      _
    $region23: #{actor_forward.1} parent=1 // pred_check_branch
      %24 = sbr.rel (0) target = $region25
    $region24: #{actor_forward.1} parent=1 // pred_region
      _
    $region25: #{actor_forward.1} parent=1 // pred_fallthru
      _
    // Predicated region
    $region26: #{actor_forward.1} parent=1 // pred_check
      _
    $region27: #{actor_forward.1} parent=1 // pred_check_branch
      %26 = sbr.rel (0) target = $region29
    $region28: #{actor_forward.1} parent=1 // pred_region
      _
    $region29: #{actor_forward.1} parent=1 // pred_fallthru
      _
    %v27 = vld [vmem:[%s0] sm:$0xff]
    %v28 = vld [vmem:[%s1] sm:$0xff]
    %v29 = vld [vmem:[%s1 + $0x8] sm:$0xff]
    %v30 = vld [vmem:[%s2] sm:$0x1]
    %v32 = vlaneseq
    %v33 = vshrl.u32 %v32, 7
    %v34 = vsub.s32 0, %v33
    %v35 = vrot.slane %v30, %v34
    %vm37 = vcmask 130048
    %v39 = vsel %vm37, %v27, 0
    %41 = vmatprep.subr.mxu0 0.0
    %42 = vmatpush1.msra.mxu0 0.0
    %43 = vmatprep.subr.mxu0 0.0
    %44 = vmatpush1.msra.mxu0 0.0
    %45 = vmatprep.subr.mxu0 0.0
    %46 = vmatpush1.msra.mxu0 0.0
    %47 = vmatprep.subr.mxu0 0.0
    %48 = vmatpush1.msra.mxu0 0.0
    %49 = vmatprep.subr.mxu0 0.0
    %50 = vmatpush1.msra.mxu0 0.0
    %51 = vmatprep.subr.mxu0 0.0
    %52 = vmatpush1.msra.mxu0 0.0
    %53 = vmatprep.subr.mxu0 0.0
    %54 = vmatpush1.msra.mxu0 0.0
    %55 = vmatprep.subr.mxu0 0.0
    %56 = vmatpush1.msra.mxu0 0.0
    %57 = vmatprep.subr.mxu0 0.0
    %58 = vmatpush1.msra.mxu0 0.0
    %59 = vmatprep.subr.mxu0 0.0
    %60 = vmatpush1.msra.mxu0 0.0
    %61 = vmatprep.subr.mxu0 0.0
    %62 = vmatpush1.msra.mxu0 0.0
    %63 = vmatprep.subr.mxu0 0.0
    %64 = vmatpush1.msra.mxu0 0.0
    %65 = vmatprep.subr.mxu0 0.0
    %66 = vmatpush1.msra.mxu0 0.0
    %67 = vmatprep.subr.mxu0 0.0
    %68 = vmatpush1.msra.mxu0 0.0
    %69 = vmatprep.subr.mxu0 0.0
    %70 = vmatpush1.msra.mxu0 %v29
    %71 = vmatprep.subr.mxu0 0.0
    %72 = vmatpush1.msra.mxu0 %v28
    %73 = vmatprep.subr.mxu0 0.0
    %74 = vmatpush2.msra.mxu0 0.0
    %75 = vmatprep.subr.mxu0 0.0
    %76 = vmatpush2.msra.mxu0 0.0
    %77 = vmatprep.subr.mxu0 0.0
    %78 = vmatpush2.msra.mxu0 0.0
    %79 = vmatprep.subr.mxu0 0.0
    %80 = vmatpush2.msra.mxu0 0.0
    %81 = vmatprep.subr.mxu0 0.0
    %82 = vmatpush2.msra.mxu0 0.0
    %83 = vmatprep.subr.mxu0 0.0
    %84 = vmatpush2.msra.mxu0 0.0
    %85 = vmatprep.subr.mxu0 0.0
    %86 = vmatpush2.msra.mxu0 0.0
    %87 = vmatprep.subr.mxu0 0.0
    %88 = vmatpush2.msra.mxu0 0.0
    %89 = vmatprep.subr.mxu0 0.0
    %90 = vmatpush2.msra.mxu0 0.0
    %91 = vmatprep.subr.mxu0 0.0
    %92 = vmatpush2.msra.mxu0 0.0
    %93 = vmatprep.subr.mxu0 0.0
    %94 = vmatpush2.msra.mxu0 0.0
    %95 = vmatprep.subr.mxu0 0.0
    %96 = vmatpush2.msra.mxu0 0.0
    %97 = vmatprep.subr.mxu0 0.0
    %98 = vmatpush2.msra.mxu0 0.0
    %99 = vmatprep.subr.mxu0 0.0
    %100 = vmatpush2.msra.mxu0 0.0
    %101 = vmatprep.subr.mxu0 0.0
    %102 = vmatpush2.msra.mxu0 0.0
    %103 = vmatprep.subr.mxu0 0.0
    %104 = vmatpush2.msra.mxu0 0.0
    %105 = vmatprep.mubr.f32.mxu0 0.0
    %106 = vmatmul.mubr.f32.gmra.mxu0 %v39
    %v107 = vpop.f32.mrf.mxu0
    %v108 = vadd.f32 %v35, %v107
    %v109 = vpop.f32.mrf.mxu0
    %110 = vdwg.mxu0
    %v111 = vmax.f32 %v108, 0.0
    %v112 = vld [vmem:[%s3] sm:$0xff]
    %v113 = vld [vmem:[%s3 + $0x8] sm:$0xff]
    %v114 = vld [vmem:[%s3 + $0x10] sm:$0xff]
    %v115 = vld [vmem:[%s3 + $0x18] sm:$0xff]
    %v116 = vld [vmem:[%s3 + $0x20] sm:$0xff]
    %v117 = vld [vmem:[%s3 + $0x28] sm:$0xff]
    %v118 = vld [vmem:[%s3 + $0x30] sm:$0xff]
    %v119 = vld [vmem:[%s3 + $0x38] sm:$0xff]
    %v120 = vld [vmem:[%s3 + $0x40] sm:$0xff]
    %v121 = vld [vmem:[%s3 + $0x48] sm:$0xff]
    %v122 = vld [vmem:[%s3 + $0x50] sm:$0xff]
    %v123 = vld [vmem:[%s3 + $0x58] sm:$0xff]
    %v124 = vld [vmem:[%s3 + $0x60] sm:$0xff]
    %v125 = vld [vmem:[%s3 + $0x68] sm:$0xff]
    %v126 = vld [vmem:[%s3 + $0x70] sm:$0xff]
    %v127 = vld [vmem:[%s3 + $0x78] sm:$0xff]
    %v128 = vld [vmem:[%s3 + $0x80] sm:$0xff]
    %v129 = vld [vmem:[%s3 + $0x88] sm:$0xff]
    %v130 = vld [vmem:[%s3 + $0x90] sm:$0xff]
    %v131 = vld [vmem:[%s3 + $0x98] sm:$0xff]
    %v132 = vld [vmem:[%s3 + $0xa0] sm:$0xff]
    %v133 = vld [vmem:[%s3 + $0xa8] sm:$0xff]
    %v134 = vld [vmem:[%s3 + $0xb0] sm:$0xff]
    %v135 = vld [vmem:[%s3 + $0xb8] sm:$0xff]
    %v136 = vld [vmem:[%s3 + $0xc0] sm:$0xff]
    %v137 = vld [vmem:[%s3 + $0xc8] sm:$0xff]
    %v138 = vld [vmem:[%s3 + $0xd0] sm:$0xff]
    %v139 = vld [vmem:[%s3 + $0xd8] sm:$0xff]
    %v140 = vld [vmem:[%s3 + $0xe0] sm:$0xff]
    %v141 = vld [vmem:[%s3 + $0xe8] sm:$0xff]
    %v142 = vld [vmem:[%s3 + $0xf0] sm:$0xff]
    %v143 = vld [vmem:[%s3 + $0xf8] sm:$0xff]
    %v144 = vld [vmem:[%s4] sm:$0x3]
    %v146 = vlaneseq
    %v147 = vshrl.u32 %v146, 7
    %v148 = vsub.s32 0, %v147
    %v149 = vrot.slane %v144, %v148
    %v150 = vlaneseq
    %v151 = vshrl.u32 %v150, 7
    %v152 = vsub.s32 1, %v151
    %v153 = vrot.slane %v144, %v152
    %156 = vmatprep.subr.mxu0 %v143
    %157 = vmatpush1.msra.mxu0 %v142
    %158 = vmatprep.subr.mxu0 %v141
    %159 = vmatpush1.msra.mxu0 %v140
    %160 = vmatprep.subr.mxu0 %v139
    %161 = vmatpush1.msra.mxu0 %v138
    %162 = vmatprep.subr.mxu0 %v137
    %163 = vmatpush1.msra.mxu0 %v136
    %164 = vmatprep.subr.mxu0 %v135
    %165 = vmatpush1.msra.mxu0 %v134
    %166 = vmatprep.subr.mxu0 %v133
    %167 = vmatpush1.msra.mxu0 %v132
    %168 = vmatprep.subr.mxu0 %v131
    %169 = vmatpush1.msra.mxu0 %v130
    %170 = vmatprep.subr.mxu0 %v129
    %171 = vmatpush1.msra.mxu0 %v128
    %172 = vmatprep.subr.mxu0 %v127
    %173 = vmatpush1.msra.mxu0 %v126
    %174 = vmatprep.subr.mxu0 %v125
    %175 = vmatpush1.msra.mxu0 %v124
    %176 = vmatprep.subr.mxu0 %v123
    %177 = vmatpush1.msra.mxu0 %v122
    %178 = vmatprep.subr.mxu0 %v121
    %179 = vmatpush1.msra.mxu0 %v120
    %180 = vmatprep.subr.mxu0 %v119
    %181 = vmatpush1.msra.mxu0 %v118
    %182 = vmatprep.subr.mxu0 %v117
    %183 = vmatpush1.msra.mxu0 %v116
    %184 = vmatprep.subr.mxu0 %v115
    %185 = vmatpush1.msra.mxu0 %v114
    %186 = vmatprep.subr.mxu0 %v113
    %187 = vmatpush1.msra.mxu0 %v112
    %188 = vmatprep.subr.mxu0 0.0
    %189 = vmatpush2.msra.mxu0 0.0
    %190 = vmatprep.subr.mxu0 0.0
    %191 = vmatpush2.msra.mxu0 0.0
    %192 = vmatprep.subr.mxu0 0.0
    %193 = vmatpush2.msra.mxu0 0.0
    %194 = vmatprep.subr.mxu0 0.0
    %195 = vmatpush2.msra.mxu0 0.0
    %196 = vmatprep.subr.mxu0 0.0
    %197 = vmatpush2.msra.mxu0 0.0
    %198 = vmatprep.subr.mxu0 0.0
    %199 = vmatpush2.msra.mxu0 0.0
    %200 = vmatprep.subr.mxu0 0.0
    %201 = vmatpush2.msra.mxu0 0.0
    %202 = vmatprep.subr.mxu0 0.0
    %203 = vmatpush2.msra.mxu0 0.0
    %204 = vmatprep.subr.mxu0 0.0
    %205 = vmatpush2.msra.mxu0 0.0
    %206 = vmatprep.subr.mxu0 0.0
    %207 = vmatpush2.msra.mxu0 0.0
    %208 = vmatprep.subr.mxu0 0.0
    %209 = vmatpush2.msra.mxu0 0.0
    %210 = vmatprep.subr.mxu0 0.0
    %211 = vmatpush2.msra.mxu0 0.0
    %212 = vmatprep.subr.mxu0 0.0
    %213 = vmatpush2.msra.mxu0 0.0
    %214 = vmatprep.subr.mxu0 0.0
    %215 = vmatpush2.msra.mxu0 0.0
    %216 = vmatprep.subr.mxu0 0.0
    %217 = vmatpush2.msra.mxu0 0.0
    %218 = vmatprep.subr.mxu0 0.0
    %219 = vmatpush2.msra.mxu0 0.0
    %220 = vmatprep.mubr.f32.mxu0 0.0
    %221 = vmatmul.mubr.f32.gmra.mxu0 %v111
    %v222 = vpop.f32.mrf.mxu0
    %v223 = vadd.f32 %v149, %v222
    %v224 = vpop.f32.mrf.mxu0
    %v225 = vadd.f32 %v153, %v224
    %226 = vdwg.mxu0
    %v227 = vmax.f32 %v223, 0.0
    %v228 = vmax.f32 %v225, 0.0
    %v229 = vld [vmem:[%s5] sm:$0xff]
    %v230 = vld [vmem:[%s5 + $0x8] sm:$0xff]
    %v231 = vld [vmem:[%s5 + $0x10] sm:$0xff]
    %v232 = vld [vmem:[%s5 + $0x18] sm:$0xff]
    %v233 = vld [vmem:[%s5 + $0x20] sm:$0xff]
    %v234 = vld [vmem:[%s5 + $0x28] sm:$0xff]
    %v235 = vld [vmem:[%s5 + $0x30] sm:$0xff]
    %v236 = vld [vmem:[%s5 + $0x38] sm:$0xff]
    %v237 = vld [vmem:[%s5 + $0x40] sm:$0xff]
    %v238 = vld [vmem:[%s5 + $0x48] sm:$0xff]
    %v239 = vld [vmem:[%s5 + $0x50] sm:$0xff]
    %v240 = vld [vmem:[%s5 + $0x58] sm:$0xff]
    %v241 = vld [vmem:[%s5 + $0x60] sm:$0xff]
    %v242 = vld [vmem:[%s5 + $0x68] sm:$0xff]
    %v243 = vld [vmem:[%s5 + $0x70] sm:$0xff]
    %v244 = vld [vmem:[%s5 + $0x78] sm:$0xff]
    %v245 = vld [vmem:[%s5 + $0x80] sm:$0xff]
    %v246 = vld [vmem:[%s5 + $0x88] sm:$0xff]
    %v247 = vld [vmem:[%s5 + $0x90] sm:$0xff]
    %v248 = vld [vmem:[%s5 + $0x98] sm:$0xff]
    %v249 = vld [vmem:[%s5 + $0xa0] sm:$0xff]
    %v250 = vld [vmem:[%s5 + $0xa8] sm:$0xff]
    %v251 = vld [vmem:[%s5 + $0xb0] sm:$0xff]
    %v252 = vld [vmem:[%s5 + $0xb8] sm:$0xff]
    %v253 = vld [vmem:[%s5 + $0xc0] sm:$0xff]
    %v254 = vld [vmem:[%s5 + $0xc8] sm:$0xff]
    %v255 = vld [vmem:[%s5 + $0xd0] sm:$0xff]
    %v256 = vld [vmem:[%s5 + $0xd8] sm:$0xff]
    %v257 = vld [vmem:[%s5 + $0xe0] sm:$0xff]
    %v258 = vld [vmem:[%s5 + $0xe8] sm:$0xff]
    %v259 = vld [vmem:[%s5 + $0xf0] sm:$0xff]
    %v260 = vld [vmem:[%s5 + $0xf8] sm:$0xff]
    %v261 = vld [vmem:[%s6] sm:$0x1]
    %v263 = vlaneseq
    %v264 = vshrl.u32 %v263, 7
    %v265 = vsub.s32 0, %v264
    %v266 = vrot.slane %v261, %v265
    %268 = vmatprep.subr.mxu0 0.0
    %269 = vmatpush1.msra.mxu0 %v244
    %270 = vmatprep.subr.mxu0 0.0
    %271 = vmatpush1.msra.mxu0 %v243
    %272 = vmatprep.subr.mxu0 0.0
    %273 = vmatpush1.msra.mxu0 %v242
    %274 = vmatprep.subr.mxu0 0.0
    %275 = vmatpush1.msra.mxu0 %v241
    %276 = vmatprep.subr.mxu0 0.0
    %277 = vmatpush1.msra.mxu0 %v240
    %278 = vmatprep.subr.mxu0 0.0
    %279 = vmatpush1.msra.mxu0 %v239
    %280 = vmatprep.subr.mxu0 0.0
    %281 = vmatpush1.msra.mxu0 %v238
    %282 = vmatprep.subr.mxu0 0.0
    %283 = vmatpush1.msra.mxu0 %v237
    %284 = vmatprep.subr.mxu0 0.0
    %285 = vmatpush1.msra.mxu0 %v236
    %286 = vmatprep.subr.mxu0 0.0
    %287 = vmatpush1.msra.mxu0 %v235
    %288 = vmatprep.subr.mxu0 0.0
    %289 = vmatpush1.msra.mxu0 %v234
    %290 = vmatprep.subr.mxu0 0.0
    %291 = vmatpush1.msra.mxu0 %v233
    %292 = vmatprep.subr.mxu0 0.0
    %293 = vmatpush1.msra.mxu0 %v232
    %294 = vmatprep.subr.mxu0 0.0
    %295 = vmatpush1.msra.mxu0 %v231
    %296 = vmatprep.subr.mxu0 0.0
    %297 = vmatpush1.msra.mxu0 %v230
    %298 = vmatprep.subr.mxu0 0.0
    %299 = vmatpush1.msra.mxu0 %v229
    %300 = vmatprep.subr.mxu0 0.0
    %301 = vmatpush2.msra.mxu0 %v260
    %302 = vmatprep.subr.mxu0 0.0
    %303 = vmatpush2.msra.mxu0 %v259
    %304 = vmatprep.subr.mxu0 0.0
    %305 = vmatpush2.msra.mxu0 %v258
    %306 = vmatprep.subr.mxu0 0.0
    %307 = vmatpush2.msra.mxu0 %v257
    %308 = vmatprep.subr.mxu0 0.0
    %309 = vmatpush2.msra.mxu0 %v256
    %310 = vmatprep.subr.mxu0 0.0
    %311 = vmatpush2.msra.mxu0 %v255
    %312 = vmatprep.subr.mxu0 0.0
    %313 = vmatpush2.msra.mxu0 %v254
    %314 = vmatprep.subr.mxu0 0.0
    %315 = vmatpush2.msra.mxu0 %v253
    %316 = vmatprep.subr.mxu0 0.0
    %317 = vmatpush2.msra.mxu0 %v252
    %318 = vmatprep.subr.mxu0 0.0
    %319 = vmatpush2.msra.mxu0 %v251
    %320 = vmatprep.subr.mxu0 0.0
    %321 = vmatpush2.msra.mxu0 %v250
    %322 = vmatprep.subr.mxu0 0.0
    %323 = vmatpush2.msra.mxu0 %v249
    %324 = vmatprep.subr.mxu0 0.0
    %325 = vmatpush2.msra.mxu0 %v248
    %326 = vmatprep.subr.mxu0 0.0
    %327 = vmatpush2.msra.mxu0 %v247
    %328 = vmatprep.subr.mxu0 0.0
    %329 = vmatpush2.msra.mxu0 %v246
    %330 = vmatprep.subr.mxu0 0.0
    %331 = vmatpush2.msra.mxu0 %v245
    %332 = vmatprep.mubr.f32.mxu0 %v228
    %333 = vmatmul.mubr.f32.gmra.mxu0 %v227
    %v334 = vpop.f32.mrf.mxu0
    %v335 = vadd.f32 %v266, %v334
    %v336 = vpop.f32.mrf.mxu0
    %337 = vdwg.mxu0
    %338 = vmax.xlane.f32.xlu0 %v335
    %v339 = vpop.xlane.xlu0 %338
    %v340 = vsub.f32 %v335, %v339
    %v341 = vmul.f32 %v340, 1.442695
    %v342 = vpow.pop %v341
    %343 = vadd.xlane.f32.xlu0 %v342
    %v344 = vpop.xlane.xlu0 %343
    %v345 = vrcp.pop %v344
    %v346 = vmul.f32 %v342, %v345
    %347 = vst [vmem:[#allocation2] sm:$0xff] %v346
    // Predicated region
    $region30: #{actor_forward.1} parent=1 // pred_check
      _
    $region31: #{actor_forward.1} parent=1 // pred_check_branch
      %349 = sbr.rel (0) target = $region33
    $region32: #{actor_forward.1} parent=1 // pred_region
      %s351 = ssub.s32 128, 128
      %352 = vsyncadd [#allocation3], %s351
      %s354 = sshll.u32 [#allocation2], 4
      %s355 = int_to_ptr.vmem [resolvable:$true] %s354
      %357 = dma.vmem_to_hbm [thread:$0]  %s355, 128, %s7, [#allocation3]
    $region33: #{actor_forward.1} parent=1 // pred_fallthru
      _
    // Predicated region
    $region34: #{actor_forward.1} parent=1 // pred_check
      _
    $region35: #{actor_forward.1} parent=1 // pred_check_branch
      %359 = sbr.rel (0) target = $region37
    $region36: #{actor_forward.1} parent=1 // pred_region
      %360 = dma.done [#allocation3], 128
    $region37: #{actor_forward.1} parent=1 // pred_fallthru
      _
    %361 = vsyncpa [#allocation3], 1

</llo_original>
